<compile_context>
chip_gen: v7x
topology: tpu7x:2x2x1
jax: 0.10.0
libtpu: 0.0.40
codegen_flags: <defaults>
</compile_context>

<pallas_src>
import functools

import jax
import jax.numpy as jnp
from jax import lax
from jax.experimental import pallas as pl
from jax.experimental.pallas import tpu as pltpu


# ----------------------- Pass 1: per-(batch, shard) input statistics ----------
# Resident accumulators over the inner spatial axis:
#   gram[n,o] = sum_s x[n,:,s] x[n,:,s]^T   -> (Cin, Cin)
#   sumx[n,o] = sum_s x[n,:,s]              -> (Cin, 1)
def _stats_kernel(x_ref, gram_ref, sumx_ref, *, hw, tile, n_inner, mask_tail):
    @pl.when(pl.program_id(2) == 0)
    def _():
        gram_ref[...] = jnp.zeros_like(gram_ref)
        sumx_ref[...] = jnp.zeros_like(sumx_ref)

    xb = x_ref[...]                                     # (Cin, tile), native dtype
    if mask_tail:
        # Last spatial block may overrun HW: zero the out-of-range lanes so the
        # (unspecified) tail data contributes nothing to sum / Gram.
        s0 = (pl.program_id(1) * n_inner + pl.program_id(2)) * tile
        lane = lax.broadcasted_iota(jnp.int32, xb.shape, 1)
        xb = jnp.where(lane < (hw - s0), xb, 0)

    # X @ X^T: contract the lane (spatial) axis of both operands on the MXU,
    # f32 accumulation.  Pass 1 is HBM-DMA-bound at practical sizes, so any
    # operand re-layout Mosaic inserts here is off the critical path.
    gram_ref[...] += lax.dot_general(xb, xb, (((1,), (1,)), ((), ())),
                                     preferred_element_type=jnp.float32)
    sumx_ref[...] += jnp.sum(xb, axis=-1, keepdims=True, dtype=jnp.float32)


# ------------------ Pass 2: fused 1x1 conv + BN affine + ReLU -----------------
def _conv_bn_relu_kernel(x_ref, w_ref, shift_ref, o_ref):
    # (Cout, Cin) @ (Cin, tile) -> (Cout, tile); BN scale is pre-folded into w,
    # so only a per-channel shift + ReLU remain.  Operands stay in the input
    # dtype (bf16 path uses bf16 MXU); accumulation is f32.
    y = jnp.dot(w_ref[...], x_ref[...], preferred_element_type=jnp.float32)
    o_ref[...] = jnp.maximum(y + shift_ref[...], 0.0).astype(o_ref.dtype)


# ----------------------------- helpers ----------------------------------------

def _tpu_vmem_budget():
    """Generation-aware scoped-VMEM budget: ~3/4 of physical, capped at 100 MiB.
    v7x (64 MiB physical) -> 48 MiB; v5e/v6e (128 MiB) -> 96 MiB."""
    cap = 64 << 20
    try:
        cap = int(getattr(pltpu.get_tpu_info(), "vmem_capacity_bytes", cap)) or cap
    except Exception:
        pass
    return max(16 << 20, min((cap * 3) // 4, 100 << 20))


def _pick_spatial_tile(hw, cin, cout, x_isz, o_isz, budget):
    """Lane tile: multiple of 128, targeting ~1 MiB per x block, shrunk until the
    double-buffered working set of the fatter pass fits the VMEM budget."""
    hw_al = -(-hw // 128) * 128
    target = 1 << 20
    tile = (target // max(1, cin * x_isz)) // 128 * 128
    tile = max(128, min(hw_al, tile))

    slack = 4 << 20
    def fits(t):
        p1 = 2 * (x_isz * cin * t) + 2 * (4 * cin * cin + 4 * cin)
        p2 = 2 * (x_isz * cin * t + o_isz * cout * t) + 4 * cout * cin + 4 * cout
        return max(p1, p2) + slack <= budget

    while tile > 128 and not fits(tile):
        tile -= 128
    return tile


def _vmem_limit(block_bytes, budget):
    # double-buffered pipelined blocks + slack, clamped to the per-gen budget.
    need = 2 * int(sum(block_bytes)) + (4 << 20)
    return int(min(budget, max(need, 32 << 20)))


# ----------------------------- ConvLayer forward ------------------------------

@functools.partial(jax.jit, static_argnames=("eps",))
def conv_layer_forward(x_nchw, w_oi, bias, gamma, beta, *, eps=1e-5):
    """ConvLayer.forward: 1x1 conv -> BatchNorm2d (training batch stats) -> ReLU.

    x_nchw : (N, Cin, H, W)  any float dtype (bf16 stays bf16 end-to-end)
    w_oi   : (Cout, Cin)     conv weight squeezed from (Cout, Cin, 1, 1)
    bias   : (Cout,)         conv bias (cancels exactly under training-mode BN;
                             accepted for API parity, unused)
    gamma  : (Cout,)         BN weight
    beta   : (Cout,)         BN bias
    returns: (N, Cout, H, W) in x's dtype
    """
    del bias  # BN subtracts the batch mean of (Wx + b): a per-channel bias cancels.
    N, cin, H, W = x_nchw.shape
    cout = w_oi.shape[0]
    hw = H * W
    M = N * hw

    x_dt = x_nchw.dtype
    out_dt = x_dt
    x_isz = x_nchw.dtype.itemsize
    o_isz = jnp.dtype(out_dt).itemsize

    budget = _tpu_vmem_budget()
    tile = _pick_spatial_tile(hw, cin, cout, x_isz, o_isz, budget)
    n_t = pl.cdiv(hw, tile)
    mask_tail = (hw % tile) != 0

    # Split the spatial reduction into (outer parallel, inner arbitrary) shards
    # so both v7x TensorCores get work even when N is tiny; partials are summed
    # in the wrapper (a tiny (Cin,Cin) reduce).
    n_outer = 2 if (n_t > 1 and n_t % 2 == 0) else 1
    n_inner = n_t // n_outer

    x = x_nchw.reshape(N, cin, hw)   # free reshape; no dtype conversion, no pad

    # ---- Pass 1: partial sum(x) and Gram(X) = X X^T (no y materialization) ----
    stats_kernel = functools.partial(_stats_kernel, hw=hw, tile=tile,
                                     n_inner=n_inner, mask_tail=mask_tail)
    # TODO(synk): optionally pipeline_mode=pl.Buffered(3) on the x spec for v5e.
    gram_p, sumx_p = pl.pallas_call(
        stats_kernel,
        out_shape=(jax.ShapeDtypeStruct((N, n_outer, cin, cin), jnp.float32),
                   jax.ShapeDtypeStruct((N, n_outer, cin, 1), jnp.float32)),
        grid_spec=pltpu.PrefetchScalarGridSpec(
            num_scalar_prefetch=0,
            grid=(N, n_outer, n_inner),
            in_specs=[pl.BlockSpec((pl.Squeezed(), cin, tile),
                                   lambda n, o, i: (n, 0, o * n_inner + i))],
            out_specs=[pl.BlockSpec((pl.Squeezed(), pl.Squeezed(), cin, cin),
                                    lambda n, o, i: (n, o, 0, 0)),
                       pl.BlockSpec((pl.Squeezed(), pl.Squeezed(), cin, 1),
                                    lambda n, o, i: (n, o, 0, 0))],
        ),
        compiler_params=pltpu.CompilerParams(
            dimension_semantics=("parallel", "parallel", "arbitrary"),
            vmem_limit_bytes=_vmem_limit(
                [x_isz * cin * tile, 4 * cin * cin, 4 * cin], budget)),
    )(x)

    # ---- Batch statistics of y = W x, derived analytically (wrapper, tiny) ----
    w = w_oi.astype(jnp.float32)                       # (Cout, Cin)
    g = jnp.sum(gram_p, axis=(0, 1))                   # (Cin, Cin)
    sx = jnp.sum(sumx_p, axis=(0, 1))[:, 0]            # (Cin,)
    mean_y = w @ (sx / M)                              # (Cout,)
    e_y2 = jnp.sum((w @ g) * w, axis=1) / M            # diag(W G W^T) / M
    var = jnp.maximum(e_y2 - mean_y * mean_y, 0.0)     # biased batch variance
    inv_std = lax.rsqrt(var + eps)
    scale = gamma.astype(jnp.float32) * inv_std        # (Cout,)
    shift = beta.astype(jnp.float32) - mean_y * scale  # (Cout,)
    w_scaled = w * scale[:, None]                      # BN scale folded into conv weight
    # bf16 inputs: keep both matmul operands bf16 for MXU rate / HBM bandwidth.
    w_k = w_scaled.astype(x_dt) if x_dt == jnp.bfloat16 else w_scaled

    # ---- Pass 2: fused conv + BN + ReLU (lane-dense spatial output, no slice) ----
    out = pl.pallas_call(
        _conv_bn_relu_kernel,
        out_shape=jax.ShapeDtypeStruct((N, cout, hw), out_dt),
        grid_spec=pltpu.PrefetchScalarGridSpec(
            num_scalar_prefetch=0,
            grid=(N, n_t),
            in_specs=[pl.BlockSpec((pl.Squeezed(), cin, tile),
                                   lambda n, s: (n, 0, s)),
                      pl.BlockSpec((cout, cin), lambda n, s: (0, 0)),
                      pl.BlockSpec((cout, 1), lambda n, s: (0, 0))],
            out_specs=pl.BlockSpec((pl.Squeezed(), cout, tile),
                                   lambda n, s: (n, 0, s)),
        ),
        compiler_params=pltpu.CompilerParams(
            dimension_semantics=("parallel", "parallel"),
            vmem_limit_bytes=_vmem_limit(
                [x_isz * cin * tile, 4 * cout * cin, 4 * cout,
                 o_isz * cout * tile], budget)),
    )(x, w_k, shift.reshape(cout, 1))

    return out.reshape(N, cout, H, W)


# ----------------------------- demo -------------------------------------------

def _reference(x, w, b, gamma, beta, eps=1e-5):
    # Pure-JAX reference: 1x1 conv (with bias) + training-mode BatchNorm2d + ReLU.
    N, Cin, H, W = x.shape
    xf = x.reshape(N, Cin, H * W).astype(jnp.float32)
    y = jnp.einsum("oc,ncs->nos", w.astype(jnp.float32), xf) + b[None, :, None]
    mu = y.mean(axis=(0, 2), keepdims=True)
    var = y.var(axis=(0, 2), keepdims=True)
    out = jnp.maximum((y - mu) * lax.rsqrt(var + eps) * gamma[None, :, None]
                      + beta[None, :, None], 0.0)
    return out.reshape(N, -1, H, W)


if __name__ == "__main__":
    def run_case(key, N, Cin, Cout, H, W):
        k_x, k_w, k_b, k_g, k_be = jax.random.split(key, 5)
        x = jax.random.normal(k_x, (N, Cin, H, W), dtype=jnp.float32)
        w = jax.random.normal(k_w, (Cout, Cin), dtype=jnp.float32) * 0.1
        b = jax.random.normal(k_b, (Cout,), dtype=jnp.float32) * 0.1
        gamma = 1.0 + 0.1 * jax.random.normal(k_g, (Cout,), dtype=jnp.float32)
        beta = 0.1 * jax.random.normal(k_be, (Cout,), dtype=jnp.float32)

        out = conv_layer_forward(x, w, b, gamma, beta)
        jax.block_until_ready(out)

        ref = _reference(x, w, b, gamma, beta)
        assert out.shape == ref.shape, (out.shape, ref.shape)
        err = float(jnp.max(jnp.abs(out.astype(jnp.float32) - ref)))
        assert err < 2e-4, f"max abs err {err}"

    key = jax.random.PRNGKey(0)
    k1, k2 = jax.random.split(key)
    run_case(k1, N=2, Cin=4, Cout=8, H=16, W=16)   # tile divides HW exactly
    run_case(k2, N=1, Cin=3, Cout=5, H=14, W=14)   # masked-tail path + tiny batch
    print("KERNEL_OK")
</pallas_src>

<mosaic_0001>
module attributes {stable_mosaic.version = 11 : i64} {
  func.func @_stats_kernel(%arg0: i32, %arg1: i32, %arg2: i32, %arg3: memref<1x4x256xf32, #tpu.memory_space<vmem>>, %arg4: memref<1x1x4x4xf32, #tpu.memory_space<vmem>>, %arg5: memref<1x1x4x1xf32, #tpu.memory_space<vmem>>) attributes {dimension_semantics = [#tpu.dimension_semantics<parallel>, #tpu.dimension_semantics<parallel>, #tpu.dimension_semantics<arbitrary>], iteration_bounds = array<i64: 2, 1, 1>, scalar_prefetch = 0 : i64, scratch_operands = 0 : i64, tpu.core_type = #tpu.core_type<tc>, window_params = [{transform_indices = @transform_0, window_bounds = array<i64: 1, 4, 256>}, {transform_indices = @transform_1, window_bounds = array<i64: 1, 1, 4, 4>}, {transform_indices = @transform_2, window_bounds = array<i64: 1, 1, 4, 1>}]} {
    %c0_i32 = arith.constant 0 : i32
    %0 = arith.cmpi eq, %arg2, %c0_i32 : i32
    %1 = arith.extui %0 : i1 to i32
    %c0_i32_0 = arith.constant 0 : i32
    %2 = arith.cmpi ne, %1, %c0_i32_0 : i32
    scf.if %2 {
      %cst_20 = arith.constant 0.000000e+00 : f32
      %20 = vector.broadcast %cst_20 : f32 to vector<4x4xf32>
      %c0_21 = arith.constant 0 : index
      %c0_22 = arith.constant 0 : index
      %c0_23 = arith.constant 0 : index
      %c0_24 = arith.constant 0 : index
      %21 = vector.load %arg4[%c0_21, %c0_22, %c0_23, %c0_24] : memref<1x1x4x4xf32, #tpu.memory_space<vmem>>, vector<1x1x4x4xf32>
      %22 = vector.shape_cast %21 : vector<1x1x4x4xf32> to vector<4x4xf32>
      %23 = vector.shape_cast %20 : vector<4x4xf32> to vector<1x1x4x4xf32>
      tpu.vector_store %arg4[%c0_21, %c0_22, %c0_23, %c0_24], %23 {strides = array<i32>} : memref<1x1x4x4xf32, #tpu.memory_space<vmem>>, vector<1x1x4x4xf32>,
      %cst_25 = arith.constant 0.000000e+00 : f32
      %24 = vector.broadcast %cst_25 : f32 to vector<4x1xf32>
      %c0_26 = arith.constant 0 : index
      %c0_27 = arith.constant 0 : index
      %c0_28 = arith.constant 0 : index
      %c0_29 = arith.constant 0 : index
      %25 = vector.load %arg5[%c0_26, %c0_27, %c0_28, %c0_29] : memref<1x1x4x1xf32, #tpu.memory_space<vmem>>, vector<1x1x4x1xf32>
      %26 = vector.shape_cast %25 : vector<1x1x4x1xf32> to vector<4x1xf32>
      %27 = vector.shape_cast %24 : vector<4x1xf32> to vector<1x1x4x1xf32>
      tpu.vector_store %arg5[%c0_26, %c0_27, %c0_28, %c0_29], %27 {strides = array<i32>} : memref<1x1x4x1xf32, #tpu.memory_space<vmem>>, vector<1x1x4x1xf32>,
    } else {
    }
    %c0 = arith.constant 0 : index
    %c0_1 = arith.constant 0 : index
    %c0_2 = arith.constant 0 : index
    %3 = vector.load %arg3[%c0, %c0_1, %c0_2] : memref<1x4x256xf32, #tpu.memory_space<vmem>>, vector<1x4x256xf32>
    %4 = vector.shape_cast %3 : vector<1x4x256xf32> to vector<4x256xf32>
    %c0_3 = arith.constant 0 : index
    %c0_4 = arith.constant 0 : index
    %c0_5 = arith.constant 0 : index
    %c0_6 = arith.constant 0 : index
    %5 = vector.load %arg4[%c0_3, %c0_4, %c0_5, %c0_6] : memref<1x1x4x4xf32, #tpu.memory_space<vmem>>, vector<1x1x4x4xf32>
    %6 = vector.shape_cast %5 : vector<1x1x4x4xf32> to vector<4x4xf32>
    %cst = arith.constant dense<0.000000e+00> : vector<4x4xf32>
    %7 = tpu.matmul %4, %4, %cst {dimension_numbers = #tpu.dot_dimension_numbers<[1], [1], [0], [0], [0, 0, 1, 0], [], []>} : vector<4x256xf32>, vector<4x256xf32>, vector<4x4xf32> -> vector<4x4xf32>
    %8 = arith.addf %6, %7 : vector<4x4xf32>
    %c0_7 = arith.constant 0 : index
    %c0_8 = arith.constant 0 : index
    %c0_9 = arith.constant 0 : index
    %c0_10 = arith.constant 0 : index
    %9 = vector.load %arg4[%c0_7, %c0_8, %c0_9, %c0_10] : memref<1x1x4x4xf32, #tpu.memory_space<vmem>>, vector<1x1x4x4xf32>
    %10 = vector.shape_cast %9 : vector<1x1x4x4xf32> to vector<4x4xf32>
    %11 = vector.shape_cast %8 : vector<4x4xf32> to vector<1x1x4x4xf32>
    tpu.vector_store %arg4[%c0_7, %c0_8, %c0_9, %c0_10], %11 {strides = array<i32>} : memref<1x1x4x4xf32, #tpu.memory_space<vmem>>, vector<1x1x4x4xf32>,
    %c0_11 = arith.constant 0 : index
    %c0_12 = arith.constant 0 : index
    %c0_13 = arith.constant 0 : index
    %c0_14 = arith.constant 0 : index
    %12 = vector.load %arg5[%c0_11, %c0_12, %c0_13, %c0_14] : memref<1x1x4x1xf32, #tpu.memory_space<vmem>>, vector<1x1x4x1xf32>
    %13 = vector.shape_cast %12 : vector<1x1x4x1xf32> to vector<4x1xf32>
    %cst_15 = arith.constant dense<0.000000e+00> : vector<4xf32>
    %14 = vector.multi_reduction <add>, %4, %cst_15 [1] : vector<4x256xf32> to vector<4xf32>
    %15 = vector.shape_cast %14 : vector<4xf32> to vector<4x1xf32>
    %16 = arith.addf %13, %15 : vector<4x1xf32>
    %c0_16 = arith.constant 0 : index
    %c0_17 = arith.constant 0 : index
    %c0_18 = arith.constant 0 : index
    %c0_19 = arith.constant 0 : index
    %17 = vector.load %arg5[%c0_16, %c0_17, %c0_18, %c0_19] : memref<1x1x4x1xf32, #tpu.memory_space<vmem>>, vector<1x1x4x1xf32>
    %18 = vector.shape_cast %17 : vector<1x1x4x1xf32> to vector<4x1xf32>
    %19 = vector.shape_cast %16 : vector<4x1xf32> to vector<1x1x4x1xf32>
    tpu.vector_store %arg5[%c0_16, %c0_17, %c0_18, %c0_19], %19 {strides = array<i32>} : memref<1x1x4x1xf32, #tpu.memory_space<vmem>>, vector<1x1x4x1xf32>,
    return
  }
  func.func @transform_0(%arg0: i32, %arg1: i32, %arg2: i32) -> (i32, i32, i32) {
    %c1_i32 = arith.constant 1 : i32
    %0 = arith.muli %arg1, %c1_i32 : i32
    %1 = arith.addi %0, %arg2 : i32
    %c0_i32 = arith.constant 0 : i32
    %c0_i32_0 = arith.constant 0 : i32
    return %arg0, %c0_i32, %1 : i32, i32, i32
  }
  func.func @transform_1(%arg0: i32, %arg1: i32, %arg2: i32) -> (i32, i32, i32, i32) {
    %c0_i32 = arith.constant 0 : i32
    %c0_i32_0 = arith.constant 0 : i32
    %c0_i32_1 = arith.constant 0 : i32
    return %arg0, %arg1, %c0_i32, %c0_i32_0 : i32, i32, i32, i32
  }
  func.func @transform_2(%arg0: i32, %arg1: i32, %arg2: i32) -> (i32, i32, i32, i32) {
    %c0_i32 = arith.constant 0 : i32
    %c0_i32_0 = arith.constant 0 : i32
    %c0_i32_1 = arith.constant 0 : i32
    return %arg0, %arg1, %c0_i32, %c0_i32_0 : i32, i32, i32, i32
  }
}

module attributes {stable_mosaic.version = 11 : i64} {
  func.func @_conv_bn_relu_kernel(%arg0: i32, %arg1: i32, %arg2: memref<1x4x256xf32, #tpu.memory_space<vmem>>, %arg3: memref<8x4xf32, #tpu.memory_space<vmem>>, %arg4: memref<8x1xf32, #tpu.memory_space<vmem>>, %arg5: memref<1x8x256xf32, #tpu.memory_space<vmem>>) attributes {dimension_semantics = [#tpu.dimension_semantics<parallel>, #tpu.dimension_semantics<parallel>], iteration_bounds = array<i64: 2, 1>, scalar_prefetch = 0 : i64, scratch_operands = 0 : i64, tpu.core_type = #tpu.core_type<tc>, window_params = [{transform_indices = @transform_0, window_bounds = array<i64: 1, 4, 256>}, {pipeline_mode = #tpu.pipeline_mode<synchronous>, transform_indices = @transform_1, window_bounds = array<i64: 8, 4>}, {pipeline_mode = #tpu.pipeline_mode<synchronous>, transform_indices = @transform_2, window_bounds = array<i64: 8, 1>}, {transform_indices = @transform_3, window_bounds = array<i64: 1, 8, 256>}]} {
    %c0 = arith.constant 0 : index
    %c0_0 = arith.constant 0 : index
    %0 = vector.load %arg3[%c0, %c0_0] : memref<8x4xf32, #tpu.memory_space<vmem>>, vector<8x4xf32>
    %c0_1 = arith.constant 0 : index
    %c0_2 = arith.constant 0 : index
    %c0_3 = arith.constant 0 : index
    %1 = vector.load %arg2[%c0_1, %c0_2, %c0_3] : memref<1x4x256xf32, #tpu.memory_space<vmem>>, vector<1x4x256xf32>
    %2 = vector.shape_cast %1 : vector<1x4x256xf32> to vector<4x256xf32>
    %cst = arith.constant dense<0.000000e+00> : vector<8x256xf32>
    %3 = tpu.matmul %0, %2, %cst {dimension_numbers = #tpu.dot_dimension_numbers<[1], [0], [0], [1], [0, 0, 1, 1], [], []>} : vector<8x4xf32>, vector<4x256xf32>, vector<8x256xf32> -> vector<8x256xf32>
    %c0_4 = arith.constant 0 : index
    %c0_5 = arith.constant 0 : index
    %4 = vector.load %arg4[%c0_4, %c0_5] : memref<8x1xf32, #tpu.memory_space<vmem>>, vector<8x1xf32>
    %5 = vector.broadcast %4 : vector<8x1xf32> to vector<8x256xf32>
    %6 = arith.addf %3, %5 : vector<8x256xf32>
    %cst_6 = arith.constant 0.000000e+00 : f32
    %7 = vector.broadcast %cst_6 : f32 to vector<8x256xf32>
    %8 = arith.maximumf %6, %7 : vector<8x256xf32>
    %c0_7 = arith.constant 0 : index
    %c0_8 = arith.constant 0 : index
    %c0_9 = arith.constant 0 : index
    %9 = vector.load %arg5[%c0_7, %c0_8, %c0_9] : memref<1x8x256xf32, #tpu.memory_space<vmem>>, vector<1x8x256xf32>
    %10 = vector.shape_cast %9 : vector<1x8x256xf32> to vector<8x256xf32>
    %11 = vector.shape_cast %8 : vector<8x256xf32> to vector<1x8x256xf32>
    tpu.vector_store %arg5[%c0_7, %c0_8, %c0_9], %11 {strides = array<i32>} : memref<1x8x256xf32, #tpu.memory_space<vmem>>, vector<1x8x256xf32>,
    return
  }
  func.func @transform_0(%arg0: i32, %arg1: i32) -> (i32, i32, i32) {
    %c0_i32 = arith.constant 0 : i32
    %c0_i32_0 = arith.constant 0 : i32
    return %arg0, %c0_i32, %arg1 : i32, i32, i32
  }
  func.func @transform_1(%arg0: i32, %arg1: i32) -> (i32, i32) {
    %c0_i32 = arith.constant 0 : i32
    %c0_i32_0 = arith.constant 0 : i32
    %c0_i32_1 = arith.constant 0 : i32
    return %c0_i32, %c0_i32_0 : i32, i32
  }
  func.func @transform_2(%arg0: i32, %arg1: i32) -> (i32, i32) {
    %c0_i32 = arith.constant 0 : i32
    %c0_i32_0 = arith.constant 0 : i32
    %c0_i32_1 = arith.constant 0 : i32
    return %c0_i32, %c0_i32_0 : i32, i32
  }
  func.func @transform_3(%arg0: i32, %arg1: i32) -> (i32, i32, i32) {
    %c0_i32 = arith.constant 0 : i32
    %c0_i32_0 = arith.constant 0 : i32
    return %arg0, %c0_i32, %arg1 : i32, i32, i32
  }
}

</mosaic_0001>

<llo_original>
// kernel: conv_layer_forward.2
$region0: #{conv_layer_forward.2}
  #allocation0 [shape = 'u32[]', space=smem, size = 0x4, offset = 0x4, fixed_abs, tag = 'smem constant byte address 0x4 - core index']
  #allocation1 [shape = 'u32[144,128]{1,0:T(1,128)}', space=vmem, size = 0x12000, scoped, tag = 'internal scratch']
  %s0 = inlined_call_operand.vmem [shape: f32[2,4,256], index: 0, kind: input, shape index: {}]
  %s1 = inlined_call_operand.vmem [shape: f32[2,1,4,4], index: 1, kind: output, shape index: {0}]
  %s2 = inlined_call_operand.vmem [shape: f32[2,1,4,1], index: 2, kind: output, shape index: {1}]
  %3 = xla_tuple %s1, %s2
  %s4 = sld [smem:[#allocation0]]
  $region49: #{conv_layer_forward.2} parent=0
    _
  %s6 = ssub.s32 1, %s4
  %s7 = scalar_select 0, %s6, %s4
  loop: start=0, step=1, limit=4
  $region2: #{conv_layer_forward.2} parent=0 // loop_pre_header
    _
  $region3: #{conv_layer_forward.2} parent=0 // loop_header
    %s9 = sphi 0, %s13
    %p10 = scmp.ge.s32.totalorder %s9, 4
    %s16 = sphi 0, %s35
    %s17 = sphi 0, %s31
    %s18 = sphi 0, %s27
    %s19 = sphi 0, %s16
    %s20 = sphi 0, %s17
    %s21 = sphi 0, %s18
    %s22 = sphi 0, %s19
    %s23 = sphi 0, %s20
    %s24 = sphi 0, %s21
    %s42 = sphi 0, %s44
    %s45 = sphi 0, %s42
    %s46 = sphi 0, %s45
    %s62 = sphi 0, %s46
    %s70 = sphi 0, %s72
    %s73 = sphi 0, %s70
    %s74 = sphi 0, %s73
    %s90 = sphi 0, %s74
    %s98 = sphi 0, %s100
    %s101 = sphi 0, %s98
    %s102 = sphi 0, %s101
    %s118 = sphi 0, %s102
  $region4: #{conv_layer_forward.2} parent=0 // loop_header_branch
    %12 = sbr.rel (%p10) target = $region8
  $region5: #{conv_layer_forward.2} parent=0 // loop_body
    %s14 = ssub.s32 %s9, 1
    %s15 = ssub.s32 %s9, 2
    %s25 = sadd.s32 1, %s18
    %p26 = scmp.ge.s32.totalorder %s25, 1
    %s27 = scalar_select %p26, 0, %s25
    %s28 = sadd.s32 1, %s17
    %s29 = scalar_select %p26, %s28, %s17
    %p30 = scmp.ge.s32.totalorder %s29, 1
    %s31 = scalar_select %p30, 0, %s29
    %s32 = sadd.s32 1, %s16
    %s33 = scalar_select %p30, %s32, %s16
    %p34 = scmp.ge.s32.totalorder %s33, 2
    %s35 = scalar_select %p34, 0, %s33
    %s36 = sadd.s32 %s17, %s18
    %s37 = sadd.s32 %s31, %s27
    %s38 = ssub.s32 %s16, %s35
    %s39 = ssub.s32 %s36, %s37
    %s40 = sor.u32 %s38, %s39
    %p41 = scmp.eq.s32.totalorder %s40, 0
    %s43 = sadd.s32 %s42, 1
    %s44 = scalar_select %p41, %s42, %s43
    %p47 = pneg %p41
    %p48 = scmp.eq.s32.totalorder %s9, 1
    %p49 = por %p47, %p48
    %p50 = scmp.ne.s32.totalorder %s42, %s45
    %p51 = scmp.eq.s32.totalorder %s9, 0
    %p52 = por %p50, %p51
    %p53 = scmp.ne.s32.totalorder %s42, %s45
    %p54 = scmp.eq.s32.totalorder %s14, 1
    %p55 = por %p53, %p54
    %p56 = scmp.ne.s32.totalorder %s45, %s46
    %p57 = scmp.eq.s32.totalorder %s14, 0
    %p58 = por %p56, %p57
    %p59 = scmp.ne.s32.totalorder %s45, %s46
    %p60 = scmp.eq.s32.totalorder %s15, 1
    %p61 = por %p59, %p60
    %p63 = scmp.ne.s32.totalorder %s46, %s62
    %p64 = scmp.eq.s32.totalorder %s15, 0
    %p65 = por %p63, %p64
    %s66 = ssub.s32 %s16, %s35
    %s67 = ssub.s32 %s17, %s31
    %s68 = sor.u32 %s66, %s67
    %p69 = scmp.eq.s32.totalorder %s68, 0
    %s71 = sadd.s32 %s70, 1
    %s72 = scalar_select %p69, %s70, %s71
    %p75 = pneg %p69
    %p76 = scmp.eq.s32.totalorder %s9, 1
    %p77 = por %p75, %p76
    %p78 = scmp.ne.s32.totalorder %s70, %s73
    %p79 = scmp.eq.s32.totalorder %s9, 0
    %p80 = por %p78, %p79
    %p81 = scmp.ne.s32.totalorder %s70, %s73
    %p82 = scmp.eq.s32.totalorder %s14, 1
    %p83 = por %p81, %p82
    %p84 = scmp.ne.s32.totalorder %s73, %s74
    %p85 = scmp.eq.s32.totalorder %s14, 0
    %p86 = por %p84, %p85
    %p87 = scmp.ne.s32.totalorder %s73, %s74
    %p88 = scmp.eq.s32.totalorder %s15, 1
    %p89 = por %p87, %p88
    %p91 = scmp.ne.s32.totalorder %s74, %s90
    %p92 = scmp.eq.s32.totalorder %s15, 0
    %p93 = por %p91, %p92
    %s94 = ssub.s32 %s16, %s35
    %s95 = ssub.s32 %s17, %s31
    %s96 = sor.u32 %s94, %s95
    %p97 = scmp.eq.s32.totalorder %s96, 0
    %s99 = sadd.s32 %s98, 1
    %s100 = scalar_select %p97, %s98, %s99
    %p103 = pneg %p97
    %p104 = scmp.eq.s32.totalorder %s9, 1
    %p105 = por %p103, %p104
    %p106 = scmp.ne.s32.totalorder %s98, %s101
    %p107 = scmp.eq.s32.totalorder %s9, 0
    %p108 = por %p106, %p107
    %p109 = scmp.ne.s32.totalorder %s98, %s101
    %p110 = scmp.eq.s32.totalorder %s14, 1
    %p111 = por %p109, %p110
    %p112 = scmp.ne.s32.totalorder %s101, %s102
    %p113 = scmp.eq.s32.totalorder %s14, 0
    %p114 = por %p112, %p113
    %p115 = scmp.ne.s32.totalorder %s101, %s102
    %p116 = scmp.eq.s32.totalorder %s15, 1
    %p117 = por %p115, %p116
    %p119 = scmp.ne.s32.totalorder %s102, %s118
    %p120 = scmp.eq.s32.totalorder %s15, 0
    %p121 = por %p119, %p120
    %p122 = scmp.le.s32.totalorder 1, %s9
    %p123 = scmp.lt.s32.totalorder %s9, 3
    %p124 = pnand %p122, %p123
    %p125 = pneg %p124
    // Predicated region
    $region9: #{conv_layer_forward.2} parent=5 // pred_check
      _
    $region10: #{conv_layer_forward.2} parent=5 // pred_check_branch
      %127 = sbr.rel (%p124) target = $region12
    $region11: #{conv_layer_forward.2} parent=5 // pred_region
      %s128 = ssub.s32 %s9, 1
    $region12: #{conv_layer_forward.2} parent=5 // pred_fallthru
      _
    %p129 = scmp.lt.s32.totalorder %s9, 2
    // Predicated region
    $region13: #{conv_layer_forward.2} parent=5 // pred_check
      %p130 = pneg %p129
    $region14: #{conv_layer_forward.2} parent=5 // pred_check_branch
      %132 = sbr.rel (%p130) target = $region16
    $region15: #{conv_layer_forward.2} parent=5 // pred_region
      // Predicated region
      $region17: #{conv_layer_forward.2} parent=15 // pred_check
        %p133 = pneg %p52
      $region18: #{conv_layer_forward.2} parent=15 // pred_check_branch
        %135 = sbr.rel (%p133) target = $region20
      $region19: #{conv_layer_forward.2} parent=15 // pred_region
        %s136 = sadd.s32 %s17, %s18
        %s137 = smul.u32 2, %s136
        %p138 = scmp.lt.s32.totalorder %s16, 1
        %s139 = scalar_select %p138, %s16, 1
        %p140 = scmp.lt.s32.totalorder %s137, 1
        %s141 = scalar_select %p140, %s137, 1
        %s142 = smul.addr %s139, 2
        %s143 = sadd.s32 %s141, %s142
        %s144 = smul.addr %s143, 4
        %s145 = scalar_lea.vmem %s0, %s144
        %s146 = sadd.s32 %s17, %s18
        %s147 = smul.u32 2, %s146
      $region20: #{conv_layer_forward.2} parent=15 // pred_fallthru
        _
    $region16: #{conv_layer_forward.2} parent=5 // pred_fallthru
      _
    %p148 = scmp.le.s32.totalorder 1, %s9
    %p149 = scmp.lt.s32.totalorder %s9, 3
    %p150 = pnand %p148, %p149
    %p151 = pneg %p150
    // Predicated region
    $region21: #{conv_layer_forward.2} parent=5 // pred_check
      _
    $region22: #{conv_layer_forward.2} parent=5 // pred_check_branch
      %153 = sbr.rel (%p150) target = $region24
    $region23: #{conv_layer_forward.2} parent=5 // pred_region
      %s154 = ssub.s32 %s9, 1
      %s155 = sadd.s32 %s20, %s21
      %s156 = smul.u32 2, %s155
      %p157 = scmp.lt.s32.totalorder %s19, 1
      %s158 = scalar_select %p157, %s19, 1
      %p159 = scmp.lt.s32.totalorder %s156, 1
      %s160 = scalar_select %p159, %s156, 1
      %s161 = smul.addr %s158, 2
      %s162 = sadd.s32 %s160, %s161
      %s163 = smul.addr %s162, 4
      %s164 = scalar_lea.vmem %s0, %s163
      %p165 = pneg %p58
      %p166 = pneg %p55
      %p167 = pneg %p86
      %p168 = pneg %p83
      %p169 = scmp.lt.s32.totalorder %s19, 1
      %s170 = scalar_select %p169, %s19, 1
      %p171 = scmp.lt.s32.totalorder %s20, 0
      %s172 = scalar_select %p171, %s20, 0
      %s173 = sadd.s32 %s172, %s170
      %s174 = smul.addr %s173, 4
      %s175 = scalar_lea.vmem %s1, %s174
      %p176 = pneg %p114
      %p177 = pneg %p111
      %p178 = scmp.lt.s32.totalorder %s19, 1
      %s179 = scalar_select %p178, %s19, 1
      %p180 = scmp.lt.s32.totalorder %s20, 0
      %s181 = scalar_select %p180, %s20, 0
      %s182 = sadd.s32 %s181, %s179
      %s183 = smul.addr %s182, 4
      %s184 = scalar_lea.vmem %s2, %s183
      %s185 = sadd.s32 %s20, %s21
      %s186 = smul.u32 2, %s185
      %p187 = scmp.lt.s32.totalorder %s19, 1
      %s188 = scalar_select %p187, %s19, 1
      %p189 = scmp.lt.s32.totalorder %s186, 1
      %s190 = scalar_select %p189, %s186, 1
      %s191 = smul.addr %s188, 2
      %s192 = sadd.s32 %s190, %s191
      %s193 = smul.addr %s192, 4
      %s194 = scalar_lea.vmem %s0, %s193
      %s195 = sadd.s32 %s20, %s21
      %s196 = smul.u32 2, %s195
      %p197 = scmp.lt.s32.totalorder %s19, 1
      %s198 = scalar_select %p197, %s19, 1
      %p199 = scmp.lt.s32.totalorder %s20, 0
      %s200 = scalar_select %p199, %s20, 0
      %s201 = sadd.s32 %s200, %s198
      %s202 = smul.addr %s201, 4
      %s203 = scalar_lea.vmem %s1, %s202
      %p204 = scmp.lt.s32.totalorder %s19, 1
      %s205 = scalar_select %p204, %s19, 1
      %p206 = scmp.lt.s32.totalorder %s20, 0
      %s207 = scalar_select %p206, %s20, 0
      %s208 = sadd.s32 %s207, %s205
      %s209 = smul.addr %s208, 4
      %s210 = scalar_lea.vmem %s2, %s209
      %p211 = scmp.eq.s32.totalorder %s21, 0
      // Predicated region
      $region25: #{conv_layer_forward.2} parent=23 // pred_check
        %p212 = pneg %p211
      $region26: #{conv_layer_forward.2} parent=23 // pred_check_branch
        %214 = sbr.rel (%p212) target = $region28
      $region27: #{conv_layer_forward.2} parent=23 // pred_region
        %vm215 = vcmask 27648
        %216 = vst.msk [vmem:[%s203] sm:$0xf] %vm215, 0.0
        %vm217 = vcmask 3072
        %218 = vst.msk [vmem:[%s210] sm:$0xf] %vm217, 0.0
      $region28: #{conv_layer_forward.2} parent=23 // pred_fallthru
        _
      %v219 = vld [vmem:[%s194] sm:$0xff]
      %v220 = vld [vmem:[%s203] sm:$0xf]
      %v222 = vcombine.high %v219, %v219
      %224 = vmatprep.subr.mxu0 %v222
      %225 = vmatpush1.xpose.msra.mxu0 %v219
      %226 = vmatprep.subr.mxu0 0.0
      %227 = vmatpush1.xpose.msra.mxu0 0.0
      %228 = vmatprep.subr.mxu0 0.0
      %229 = vmatpush1.xpose.msra.mxu0 0.0
      %230 = vmatprep.subr.mxu0 0.0
      %231 = vmatpush1.xpose.msra.mxu0 0.0
      %232 = vmatprep.subr.mxu0 0.0
      %233 = vmatpush1.xpose.msra.mxu0 0.0
      %234 = vmatprep.subr.mxu0 0.0
      %235 = vmatpush1.xpose.msra.mxu0 0.0
      %236 = vmatprep.subr.mxu0 0.0
      %237 = vmatpush1.xpose.msra.mxu0 0.0
      %238 = vmatprep.subr.mxu0 0.0
      %239 = vmatpush1.xpose.msra.mxu0 0.0
      %240 = vmatprep.subr.mxu0 0.0
      %241 = vmatpush1.xpose.msra.mxu0 0.0
      %242 = vmatprep.subr.mxu0 0.0
      %243 = vmatpush1.xpose.msra.mxu0 0.0
      %244 = vmatprep.subr.mxu0 0.0
      %245 = vmatpush1.xpose.msra.mxu0 0.0
      %246 = vmatprep.subr.mxu0 0.0
      %247 = vmatpush1.xpose.msra.mxu0 0.0
      %248 = vmatprep.subr.mxu0 0.0
      %249 = vmatpush1.xpose.msra.mxu0 0.0
      %250 = vmatprep.subr.mxu0 0.0
      %251 = vmatpush1.xpose.msra.mxu0 0.0
      %252 = vmatprep.subr.mxu0 0.0
      %253 = vmatpush1.xpose.msra.mxu0 0.0
      %254 = vmatprep.subr.mxu0 0.0
      %255 = vmatpush1.xpose.msra.mxu0 0.0
      %256 = vmatprep.subr.mxu0 0.0
      %257 = vmatpush1.xpose.msra.mxu0 0.0
      %258 = vmatprep.subr.mxu0 0.0
      %259 = vmatpush1.xpose.msra.mxu0 0.0
      %260 = vmatprep.subr.mxu0 0.0
      %261 = vmatpush1.xpose.msra.mxu0 0.0
      %262 = vmatprep.subr.mxu0 0.0
      %263 = vmatpush1.xpose.msra.mxu0 0.0
      %264 = vmatprep.subr.mxu0 0.0
      %265 = vmatpush1.xpose.msra.mxu0 0.0
      %266 = vmatprep.subr.mxu0 0.0
      %267 = vmatpush1.xpose.msra.mxu0 0.0
      %268 = vmatprep.subr.mxu0 0.0
      %269 = vmatpush1.xpose.msra.mxu0 0.0
      %270 = vmatprep.subr.mxu0 0.0
      %271 = vmatpush1.xpose.msra.mxu0 0.0
      %272 = vmatprep.subr.mxu0 0.0
      %273 = vmatpush1.xpose.msra.mxu0 0.0
      %274 = vmatprep.subr.mxu0 0.0
      %275 = vmatpush1.xpose.msra.mxu0 0.0
      %276 = vmatprep.subr.mxu0 0.0
      %277 = vmatpush1.xpose.msra.mxu0 0.0
      %278 = vmatprep.subr.mxu0 0.0
      %279 = vmatpush1.xpose.msra.mxu0 0.0
      %280 = vmatprep.subr.mxu0 0.0
      %281 = vmatpush1.xpose.msra.mxu0 0.0
      %282 = vmatprep.subr.mxu0 0.0
      %283 = vmatpush1.xpose.msra.mxu0 0.0
      %284 = vmatprep.subr.mxu0 0.0
      %285 = vmatpush1.xpose.msra.mxu0 0.0
      %286 = vmatprep.subr.mxu0 0.0
      %287 = vmatpush1.xpose.msra.mxu0 0.0
      %288 = vmatprep.mubr.f32.mxu0 %v222
      %289 = vmatmul.mubr.f32.gmra.mrb[0].mxu0 %v219
      %v290 = vpop.f32.mrb[0].mxu0
      %v291 = vadd.f32 0.0, %v290
      %v292 = vpop.f32.mrb[0].mxu0
      %293 = vdwg.mxu0
      %v294 = vadd.f32 %v220, %v291
      %vm295 = vcmask 27648
      %296 = vst.msk [vmem:[%s203] sm:$0xf] %vm295, %v294
      %v297 = vld [vmem:[%s210] sm:$0xf]
      %vm298 = vcmask 1043456
      %v299 = vsel %vm298, %v219, 0.0
      %v300 = vsel %vm298, %v222, 0.0
      %v301 = vadd.f32 %v299, %v300
      %302 = vadd.xlane.f32.xlu0 %v301
      %v303 = vpop.xlane.xlu0 %302
      %v304 = vadd.f32 %v297, %v303
      %vm305 = vcmask 3072
      %306 = vst.msk [vmem:[%s210] sm:$0xf] %vm305, %v304
      %p307 = scmp.lt.s32.totalorder %s19, 1
      %s308 = scalar_select %p307, %s19, 1
      %p309 = scmp.lt.s32.totalorder %s20, 0
      %s310 = scalar_select %p309, %s20, 0
      %s311 = sadd.s32 %s310, %s308
      %s312 = smul.addr %s311, 4
      %s313 = scalar_lea.vmem %s1, %s312
      %p314 = scmp.lt.s32.totalorder %s19, 1
      %s315 = scalar_select %p314, %s19, 1
      %p316 = scmp.lt.s32.totalorder %s20, 0
      %s317 = scalar_select %p316, %s20, 0
      %s318 = sadd.s32 %s317, %s315
      %s319 = smul.addr %s318, 4
      %s320 = scalar_lea.vmem %s2, %s319
      // Predicated region
      $region29: #{conv_layer_forward.2} parent=23 // pred_check
        %p321 = pneg %p83
      $region30: #{conv_layer_forward.2} parent=23 // pred_check_branch
        %323 = sbr.rel (%p321) target = $region32
      $region31: #{conv_layer_forward.2} parent=23 // pred_region
        _
      $region32: #{conv_layer_forward.2} parent=23 // pred_fallthru
        _
      // Predicated region
      $region33: #{conv_layer_forward.2} parent=23 // pred_check
        %p324 = pneg %p111
      $region34: #{conv_layer_forward.2} parent=23 // pred_check_branch
        %326 = sbr.rel (%p324) target = $region36
      $region35: #{conv_layer_forward.2} parent=23 // pred_region
        _
      $region36: #{conv_layer_forward.2} parent=23 // pred_fallthru
        _
    $region24: #{conv_layer_forward.2} parent=5 // pred_fallthru
      _
    %p327 = scmp.le.s32.totalorder 2, %s9
    // Predicated region
    $region37: #{conv_layer_forward.2} parent=5 // pred_check
      %p328 = pneg %p327
    $region38: #{conv_layer_forward.2} parent=5 // pred_check_branch
      %330 = sbr.rel (%p328) target = $region40
    $region39: #{conv_layer_forward.2} parent=5 // pred_region
      %s331 = ssub.s32 %s9, 2
      // Predicated region
      $region41: #{conv_layer_forward.2} parent=39 // pred_check
        %p332 = pneg %p89
      $region42: #{conv_layer_forward.2} parent=39 // pred_check_branch
        %334 = sbr.rel (%p332) target = $region44
      $region43: #{conv_layer_forward.2} parent=39 // pred_region
        %p335 = scmp.lt.s32.totalorder %s22, 1
        %s336 = scalar_select %p335, %s22, 1
        %p337 = scmp.lt.s32.totalorder %s23, 0
        %s338 = scalar_select %p337, %s23, 0
        %s339 = sadd.s32 %s338, %s336
        %s340 = smul.addr %s339, 4
        %s341 = scalar_lea.vmem %s1, %s340
      $region44: #{conv_layer_forward.2} parent=39 // pred_fallthru
        _
      // Predicated region
      $region45: #{conv_layer_forward.2} parent=39 // pred_check
        %p342 = pneg %p117
      $region46: #{conv_layer_forward.2} parent=39 // pred_check_branch
        %344 = sbr.rel (%p342) target = $region48
      $region47: #{conv_layer_forward.2} parent=39 // pred_region
        %p345 = scmp.lt.s32.totalorder %s22, 1
        %s346 = scalar_select %p345, %s22, 1
        %p347 = scmp.lt.s32.totalorder %s23, 0
        %s348 = scalar_select %p347, %s23, 0
        %s349 = sadd.s32 %s348, %s346
        %s350 = smul.addr %s349, 4
        %s351 = scalar_lea.vmem %s2, %s350
      $region48: #{conv_layer_forward.2} parent=39 // pred_fallthru
        _
    $region40: #{conv_layer_forward.2} parent=5 // pred_fallthru
      _
  $region6: #{conv_layer_forward.2} parent=0 // loop_footer
    %s13 = sadd.s32 1, %s9
  $region7: #{conv_layer_forward.2} parent=0 // loop_footer_branch
    %8 = sbr.rel target = $region3
  $region8: #{conv_layer_forward.2} parent=0 // loop_exit
    _

// kernel: conv_layer_forward.3
$region0: #{conv_layer_forward.3}
  #allocation0 [shape = 'u32[]', space=smem, size = 0x4, offset = 0x4, fixed_abs, tag = 'smem constant byte address 0x4 - core index']
  #allocation1 [shape = 'u32[144,128]{1,0:T(1,128)}', space=vmem, size = 0x12000, scoped, tag = 'internal scratch']
  %s0 = inlined_call_operand.vmem [shape: f32[2,4,256], index: 0, kind: input, shape index: {}]
  %s1 = inlined_call_operand.vmem [shape: f32[8,4], index: 1, kind: input, shape index: {}]
  %s2 = inlined_call_operand.vmem [shape: f32[8,1], index: 2, kind: input, shape index: {}]
  %s3 = inlined_call_operand.vmem [shape: f32[2,8,256], index: 3, kind: output, shape index: {}]
  %s4 = sld [smem:[#allocation0]]
  $region45: #{conv_layer_forward.3} parent=0
    _
  %s6 = ssub.s32 1, %s4
  %s7 = scalar_select 0, %s6, %s4
  loop: start=0, step=1, limit=4
  $region2: #{conv_layer_forward.3} parent=0 // loop_pre_header
    _
  $region3: #{conv_layer_forward.3} parent=0 // loop_header
    %s9 = sphi 0, %s13
    %p10 = scmp.ge.s32.totalorder %s9, 4
    %s16 = sphi 0, %s28
    %s17 = sphi 0, %s24
    %s18 = sphi 0, %s16
    %s19 = sphi 0, %s17
    %s20 = sphi 0, %s18
    %s21 = sphi 0, %s19
    %s33 = sphi 0, %s35
    %s36 = sphi 0, %s33
    %s37 = sphi 0, %s36
    %s53 = sphi 0, %s37
    %s57 = sphi 0, %s57
    %s59 = sphi 0, %s57
    %s60 = sphi 0, %s59
    %s74 = sphi 0, %s60
    %s78 = sphi 0, %s78
    %s80 = sphi 0, %s78
    %s81 = sphi 0, %s80
    %s95 = sphi 0, %s81
    %s103 = sphi 0, %s105
    %s106 = sphi 0, %s103
    %s107 = sphi 0, %s106
    %s123 = sphi 0, %s107
  $region4: #{conv_layer_forward.3} parent=0 // loop_header_branch
    %12 = sbr.rel (%p10) target = $region8
  $region5: #{conv_layer_forward.3} parent=0 // loop_body
    %s14 = ssub.s32 %s9, 1
    %s15 = ssub.s32 %s9, 2
    %s22 = sadd.s32 1, %s17
    %p23 = scmp.ge.s32.totalorder %s22, 1
    %s24 = scalar_select %p23, 0, %s22
    %s25 = sadd.s32 1, %s16
    %s26 = scalar_select %p23, %s25, %s16
    %p27 = scmp.ge.s32.totalorder %s26, 2
    %s28 = scalar_select %p27, 0, %s26
    %s29 = ssub.s32 %s16, %s28
    %s30 = ssub.s32 %s17, %s24
    %s31 = sor.u32 %s29, %s30
    %p32 = scmp.eq.s32.totalorder %s31, 0
    %s34 = sadd.s32 %s33, 1
    %s35 = scalar_select %p32, %s33, %s34
    %p38 = pneg %p32
    %p39 = scmp.eq.s32.totalorder %s9, 1
    %p40 = por %p38, %p39
    %p41 = scmp.ne.s32.totalorder %s33, %s36
    %p42 = scmp.eq.s32.totalorder %s9, 0
    %p43 = por %p41, %p42
    %p44 = scmp.ne.s32.totalorder %s33, %s36
    %p45 = scmp.eq.s32.totalorder %s14, 1
    %p46 = por %p44, %p45
    %p47 = scmp.ne.s32.totalorder %s36, %s37
    %p48 = scmp.eq.s32.totalorder %s14, 0
    %p49 = por %p47, %p48
    %p50 = scmp.ne.s32.totalorder %s36, %s37
    %p51 = scmp.eq.s32.totalorder %s15, 1
    %p52 = por %p50, %p51
    %p54 = scmp.ne.s32.totalorder %s37, %s53
    %p55 = scmp.eq.s32.totalorder %s15, 0
    %p56 = por %p54, %p55
    %s58 = sadd.s32 %s57, 1
    %p61 = scmp.eq.s32.totalorder %s9, 1
    %p62 = scmp.ne.s32.totalorder %s57, %s59
    %p63 = scmp.eq.s32.totalorder %s9, 0
    %p64 = por %p62, %p63
    %p65 = scmp.ne.s32.totalorder %s57, %s59
    %p66 = scmp.eq.s32.totalorder %s14, 1
    %p67 = por %p65, %p66
    %p68 = scmp.ne.s32.totalorder %s59, %s60
    %p69 = scmp.eq.s32.totalorder %s14, 0
    %p70 = por %p68, %p69
    %p71 = scmp.ne.s32.totalorder %s59, %s60
    %p72 = scmp.eq.s32.totalorder %s15, 1
    %p73 = por %p71, %p72
    %p75 = scmp.ne.s32.totalorder %s60, %s74
    %p76 = scmp.eq.s32.totalorder %s15, 0
    %p77 = por %p75, %p76
    %s79 = sadd.s32 %s78, 1
    %p82 = scmp.eq.s32.totalorder %s9, 1
    %p83 = scmp.ne.s32.totalorder %s78, %s80
    %p84 = scmp.eq.s32.totalorder %s9, 0
    %p85 = por %p83, %p84
    %p86 = scmp.ne.s32.totalorder %s78, %s80
    %p87 = scmp.eq.s32.totalorder %s14, 1
    %p88 = por %p86, %p87
    %p89 = scmp.ne.s32.totalorder %s80, %s81
    %p90 = scmp.eq.s32.totalorder %s14, 0
    %p91 = por %p89, %p90
    %p92 = scmp.ne.s32.totalorder %s80, %s81
    %p93 = scmp.eq.s32.totalorder %s15, 1
    %p94 = por %p92, %p93
    %p96 = scmp.ne.s32.totalorder %s81, %s95
    %p97 = scmp.eq.s32.totalorder %s15, 0
    %p98 = por %p96, %p97
    %s99 = ssub.s32 %s16, %s28
    %s100 = ssub.s32 %s17, %s24
    %s101 = sor.u32 %s99, %s100
    %p102 = scmp.eq.s32.totalorder %s101, 0
    %s104 = sadd.s32 %s103, 1
    %s105 = scalar_select %p102, %s103, %s104
    %p108 = pneg %p102
    %p109 = scmp.eq.s32.totalorder %s9, 1
    %p110 = por %p108, %p109
    %p111 = scmp.ne.s32.totalorder %s103, %s106
    %p112 = scmp.eq.s32.totalorder %s9, 0
    %p113 = por %p111, %p112
    %p114 = scmp.ne.s32.totalorder %s103, %s106
    %p115 = scmp.eq.s32.totalorder %s14, 1
    %p116 = por %p114, %p115
    %p117 = scmp.ne.s32.totalorder %s106, %s107
    %p118 = scmp.eq.s32.totalorder %s14, 0
    %p119 = por %p117, %p118
    %p120 = scmp.ne.s32.totalorder %s106, %s107
    %p121 = scmp.eq.s32.totalorder %s15, 1
    %p122 = por %p120, %p121
    %p124 = scmp.ne.s32.totalorder %s107, %s123
    %p125 = scmp.eq.s32.totalorder %s15, 0
    %p126 = por %p124, %p125
    %p127 = scmp.le.s32.totalorder 1, %s9
    %p128 = scmp.lt.s32.totalorder %s9, 3
    %p129 = pnand %p127, %p128
    %p130 = pneg %p129
    // Predicated region
    $region9: #{conv_layer_forward.3} parent=5 // pred_check
      _
    $region10: #{conv_layer_forward.3} parent=5 // pred_check_branch
      %132 = sbr.rel (%p129) target = $region12
    $region11: #{conv_layer_forward.3} parent=5 // pred_region
      %s133 = ssub.s32 %s9, 1
      // Predicated region
      $region13: #{conv_layer_forward.3} parent=11 // pred_check
        %p134 = pneg %p70
      $region14: #{conv_layer_forward.3} parent=11 // pred_check_branch
        %136 = sbr.rel (%p134) target = $region16
      $region15: #{conv_layer_forward.3} parent=11 // pred_region
        _
      $region16: #{conv_layer_forward.3} parent=11 // pred_fallthru
        _
      // Predicated region
      $region17: #{conv_layer_forward.3} parent=11 // pred_check
        %p137 = pneg %p91
      $region18: #{conv_layer_forward.3} parent=11 // pred_check_branch
        %139 = sbr.rel (%p137) target = $region20
      $region19: #{conv_layer_forward.3} parent=11 // pred_region
        _
      $region20: #{conv_layer_forward.3} parent=11 // pred_fallthru
        _
    $region12: #{conv_layer_forward.3} parent=5 // pred_fallthru
      _
    %p140 = scmp.lt.s32.totalorder %s9, 2
    // Predicated region
    $region21: #{conv_layer_forward.3} parent=5 // pred_check
      %p141 = pneg %p140
    $region22: #{conv_layer_forward.3} parent=5 // pred_check_branch
      %143 = sbr.rel (%p141) target = $region24
    $region23: #{conv_layer_forward.3} parent=5 // pred_region
      // Predicated region
      $region25: #{conv_layer_forward.3} parent=23 // pred_check
        %p144 = pneg %p43
      $region26: #{conv_layer_forward.3} parent=23 // pred_check_branch
        %146 = sbr.rel (%p144) target = $region28
      $region27: #{conv_layer_forward.3} parent=23 // pred_region
        %s147 = smul.u32 2, %s17
        %p148 = scmp.lt.s32.totalorder %s16, 1
        %s149 = scalar_select %p148, %s16, 1
        %p150 = scmp.lt.s32.totalorder %s147, 1
        %s151 = scalar_select %p150, %s147, 1
        %s152 = smul.addr %s149, 2
        %s153 = sadd.s32 %s151, %s152
        %s154 = smul.addr %s153, 4
        %s155 = scalar_lea.vmem %s0, %s154
        %s156 = smul.u32 2, %s17
      $region28: #{conv_layer_forward.3} parent=23 // pred_fallthru
        _
    $region24: #{conv_layer_forward.3} parent=5 // pred_fallthru
      _
    %p157 = scmp.le.s32.totalorder 1, %s9
    %p158 = scmp.lt.s32.totalorder %s9, 3
    %p159 = pnand %p157, %p158
    %p160 = pneg %p159
    // Predicated region
    $region29: #{conv_layer_forward.3} parent=5 // pred_check
      _
    $region30: #{conv_layer_forward.3} parent=5 // pred_check_branch
      %162 = sbr.rel (%p159) target = $region32
    $region31: #{conv_layer_forward.3} parent=5 // pred_region
      %s163 = ssub.s32 %s9, 1
      %s164 = smul.u32 2, %s19
      %p165 = scmp.lt.s32.totalorder %s18, 1
      %s166 = scalar_select %p165, %s18, 1
      %p167 = scmp.lt.s32.totalorder %s164, 1
      %s168 = scalar_select %p167, %s164, 1
      %s169 = smul.addr %s166, 2
      %s170 = sadd.s32 %s168, %s169
      %s171 = smul.addr %s170, 4
      %s172 = scalar_lea.vmem %s0, %s171
      %p173 = pneg %p49
      %p174 = pneg %p46
      %p175 = pneg %p70
      %p176 = pneg %p67
      %p177 = pneg %p91
      %p178 = pneg %p88
      %p179 = pneg %p119
      %p180 = pneg %p116
      %s181 = smul.u32 2, %s19
      %p182 = scmp.lt.s32.totalorder %s18, 1
      %s183 = scalar_select %p182, %s18, 1
      %p184 = scmp.lt.s32.totalorder %s181, 1
      %s185 = scalar_select %p184, %s181, 1
      %s186 = smul.addr %s183, 2
      %s187 = sadd.s32 %s185, %s186
      %s188 = smul.addr %s187, 8
      %s189 = scalar_lea.vmem %s3, %s188
      %s190 = smul.u32 2, %s19
      %p191 = scmp.lt.s32.totalorder %s18, 1
      %s192 = scalar_select %p191, %s18, 1
      %p193 = scmp.lt.s32.totalorder %s190, 1
      %s194 = scalar_select %p193, %s190, 1
      %s195 = smul.addr %s192, 2
      %s196 = sadd.s32 %s194, %s195
      %s197 = smul.addr %s196, 4
      %s198 = scalar_lea.vmem %s0, %s197
      %s199 = smul.u32 2, %s19
      %s200 = smul.u32 2, %s19
      %p201 = scmp.lt.s32.totalorder %s18, 1
      %s202 = scalar_select %p201, %s18, 1
      %p203 = scmp.lt.s32.totalorder %s200, 1
      %s204 = scalar_select %p203, %s200, 1
      %s205 = smul.addr %s202, 2
      %s206 = sadd.s32 %s204, %s205
      %s207 = smul.addr %s206, 8
      %s208 = scalar_lea.vmem %s3, %s207
      %s209 = smul.u32 2, %s19
      %v210 = vld [vmem:[%s1] sm:$0xff]
      %v211 = vld [vmem:[%s198] sm:$0xff]
      %v212 = vld [vmem:[%s2] sm:$0xff]
      %214 = vset.pattern.permute.xlu0 0
      %215 = vperm.xlu0 %214, %v212
      %v216 = vpop.permute.xlu0 %215
      %v219 = vcombine.high %v211, %v211
      %vm220 = vcmask 31744
      %v222 = vsel %vm220, %v210, 0
      %vm224 = vcmask 1043456
      %v225 = vsel %vm224, %v211, 0
      %v227 = vsel %vm224, %v219, 0
      %229 = vmatprep.subr.mxu0 %v227
      %230 = vmatpush1.msra.mxu0 %v225
      %231 = vmatprep.subr.mxu0 0.0
      %232 = vmatpush1.msra.mxu0 0.0
      %233 = vmatprep.subr.mxu0 0.0
      %234 = vmatpush1.msra.mxu0 0.0
      %235 = vmatprep.subr.mxu0 0.0
      %236 = vmatpush1.msra.mxu0 0.0
      %237 = vmatprep.subr.mxu0 0.0
      %238 = vmatpush1.msra.mxu0 0.0
      %239 = vmatprep.subr.mxu0 0.0
      %240 = vmatpush1.msra.mxu0 0.0
      %241 = vmatprep.subr.mxu0 0.0
      %242 = vmatpush1.msra.mxu0 0.0
      %243 = vmatprep.subr.mxu0 0.0
      %244 = vmatpush1.msra.mxu0 0.0
      %245 = vmatprep.subr.mxu0 0.0
      %246 = vmatpush1.msra.mxu0 0.0
      %247 = vmatprep.subr.mxu0 0.0
      %248 = vmatpush1.msra.mxu0 0.0
      %249 = vmatprep.subr.mxu0 0.0
      %250 = vmatpush1.msra.mxu0 0.0
      %251 = vmatprep.subr.mxu0 0.0
      %252 = vmatpush1.msra.mxu0 0.0
      %253 = vmatprep.subr.mxu0 0.0
      %254 = vmatpush1.msra.mxu0 0.0
      %255 = vmatprep.subr.mxu0 0.0
      %256 = vmatpush1.msra.mxu0 0.0
      %257 = vmatprep.subr.mxu0 0.0
      %258 = vmatpush1.msra.mxu0 0.0
      %259 = vmatprep.subr.mxu0 0.0
      %260 = vmatpush1.msra.mxu0 0.0
      %261 = vmatprep.subr.mxu0 0.0
      %262 = vmatpush1.msra.mxu0 0.0
      %263 = vmatprep.subr.mxu0 0.0
      %264 = vmatpush1.msra.mxu0 0.0
      %265 = vmatprep.subr.mxu0 0.0
      %266 = vmatpush1.msra.mxu0 0.0
      %267 = vmatprep.subr.mxu0 0.0
      %268 = vmatpush1.msra.mxu0 0.0
      %269 = vmatprep.subr.mxu0 0.0
      %270 = vmatpush1.msra.mxu0 0.0
      %271 = vmatprep.subr.mxu0 0.0
      %272 = vmatpush1.msra.mxu0 0.0
      %273 = vmatprep.subr.mxu0 0.0
      %274 = vmatpush1.msra.mxu0 0.0
      %275 = vmatprep.subr.mxu0 0.0
      %276 = vmatpush1.msra.mxu0 0.0
      %277 = vmatprep.subr.mxu0 0.0
      %278 = vmatpush1.msra.mxu0 0.0
      %279 = vmatprep.subr.mxu0 0.0
      %280 = vmatpush1.msra.mxu0 0.0
      %281 = vmatprep.subr.mxu0 0.0
      %282 = vmatpush1.msra.mxu0 0.0
      %283 = vmatprep.subr.mxu0 0.0
      %284 = vmatpush1.msra.mxu0 0.0
      %285 = vmatprep.subr.mxu0 0.0
      %286 = vmatpush1.msra.mxu0 0.0
      %287 = vmatprep.subr.mxu0 0.0
      %288 = vmatpush1.msra.mxu0 0.0
      %289 = vmatprep.subr.mxu0 0.0
      %290 = vmatpush1.msra.mxu0 0.0
      %291 = vmatprep.subr.mxu0 0.0
      %292 = vmatpush1.msra.mxu0 0.0
      %293 = vmatprep.mubr.f32.mxu0 0.0
      %294 = vmatmul.mubr.f32.gmra.mrb[0].mxu0 %v222
      %v295 = vpop.f32.mrb[0].mxu0
      %v296 = vadd.f32 %v216, %v295
      %v297 = vpop.f32.mrb[0].mxu0
      %v298 = vadd.f32 %v216, %v297
      %299 = vdwg.mxu0
      %v300 = vmax.f32 %v296, 0.0
      %v301 = vmax.f32 %v298, 0.0
      %302 = vst [vmem:[%s208] sm:$0xff] %v300
      %303 = vst [vmem:[%s208 + $0x8] sm:$0xff] %v301
      %s304 = smul.u32 2, %s19
      %p305 = scmp.lt.s32.totalorder %s18, 1
      %s306 = scalar_select %p305, %s18, 1
      %p307 = scmp.lt.s32.totalorder %s304, 1
      %s308 = scalar_select %p307, %s304, 1
      %s309 = smul.addr %s306, 2
      %s310 = sadd.s32 %s308, %s309
      %s311 = smul.addr %s310, 8
      %s312 = scalar_lea.vmem %s3, %s311
      // Predicated region
      $region33: #{conv_layer_forward.3} parent=31 // pred_check
        %p313 = pneg %p116
      $region34: #{conv_layer_forward.3} parent=31 // pred_check_branch
        %315 = sbr.rel (%p313) target = $region36
      $region35: #{conv_layer_forward.3} parent=31 // pred_region
        %s316 = smul.u32 2, %s19
      $region36: #{conv_layer_forward.3} parent=31 // pred_fallthru
        _
    $region32: #{conv_layer_forward.3} parent=5 // pred_fallthru
      _
    %p317 = scmp.le.s32.totalorder 2, %s9
    // Predicated region
    $region37: #{conv_layer_forward.3} parent=5 // pred_check
      %p318 = pneg %p317
    $region38: #{conv_layer_forward.3} parent=5 // pred_check_branch
      %320 = sbr.rel (%p318) target = $region40
    $region39: #{conv_layer_forward.3} parent=5 // pred_region
      %s321 = ssub.s32 %s9, 2
      // Predicated region
      $region41: #{conv_layer_forward.3} parent=39 // pred_check
        %p322 = pneg %p122
      $region42: #{conv_layer_forward.3} parent=39 // pred_check_branch
        %324 = sbr.rel (%p322) target = $region44
      $region43: #{conv_layer_forward.3} parent=39 // pred_region
        %s325 = smul.u32 2, %s21
        %p326 = scmp.lt.s32.totalorder %s20, 1
        %s327 = scalar_select %p326, %s20, 1
        %p328 = scmp.lt.s32.totalorder %s325, 1
        %s329 = scalar_select %p328, %s325, 1
        %s330 = smul.addr %s327, 2
        %s331 = sadd.s32 %s329, %s330
        %s332 = smul.addr %s331, 8
        %s333 = scalar_lea.vmem %s3, %s332
      $region44: #{conv_layer_forward.3} parent=39 // pred_fallthru
        _
    $region40: #{conv_layer_forward.3} parent=5 // pred_fallthru
      _
  $region6: #{conv_layer_forward.3} parent=0 // loop_footer
    %s13 = sadd.s32 1, %s9
  $region7: #{conv_layer_forward.3} parent=0 // loop_footer_branch
    %8 = sbr.rel target = $region3
  $region8: #{conv_layer_forward.3} parent=0 // loop_exit
    _

</llo_original>
